<compile_context>
chip_gen: v7x
topology: tpu7x:2x2x1
jax: 0.10.0
libtpu: 0.0.40
codegen_flags: <defaults>
</compile_context>

<pallas_src>
from functools import partial

import jax
import jax.numpy as jnp
from jax.experimental import pallas as pl
from jax.experimental.pallas import tpu as pltpu

# class index convention (matches spam_subtype_mapping in the PyTorch code)
IS_SPAM_IDX = 4     # 'IsSpam'
EMPTY_IDX = 5       # 'Empty'
NUM_CLASSES = 8
LANE = 128
ROW_ALIGN = 32      # int8 native tiling is (32,128); keep every dtype's block tile-aligned
PAD_LOGIT = -100.0  # padded elements (label=0, mask=1) contribute ~exp(-100) ~= 0
NUM_SLICES = 2      # outer "parallel" grid axis -> one slice per TensorCore on v7x


def _round_up(x, m):
    return ((x + m - 1) // m) * m


def _masked_bce_loss_kernel(x_ref, y_ref, m_ref, out_ref, acc_ref, *, inv_bc):
    """Flat [tile_rows, 128] blocks of logits / labels / int8 keep-mask.

    mask semantics: 1 = keep logit, 0 = zero the logit (Empty-only sample, class < IsSpam).
    Batch padding was encoded in the wrapper (logit=-100, label=0, mask=1) so padded
    elements contribute ~0 and no validity select is needed here.
    """
    r = pl.program_id(1)

    @pl.when(r == 0)
    def _init():
        acc_ref[...] = jnp.zeros_like(acc_ref)

    x = x_ref[...].astype(jnp.float32)        # [T, 128]
    y = y_ref[...].astype(jnp.float32)        # [T, 128]
    keep = m_ref[...].astype(jnp.float32)     # [T, 128], 0/1

    # single fused masking op (mask precomputed in wrapper; no iota/compare here)
    z = x * keep
    # numerically stable BCE-with-logits; exp/log1p run on the EUP slot
    per_elem = jnp.maximum(z, 0.0) - z * y + jnp.log1p(jnp.exp(-jnp.abs(z)))

    # elementwise accumulate; single cross-lane reduce happens once per slice below
    acc_ref[...] += per_elem

    @pl.when(r == pl.num_programs(1) - 1)
    def _finalize():
        partial_loss = jnp.sum(acc_ref[...]) * inv_bc
        # lane-dense broadcast store; wrapper reads element [i, 0, 0] per slice
        out_ref[...] = jnp.zeros_like(out_ref) + partial_loss


def custom_masked_loss(output, label, pipelines, *, tile_rows=4096):
    """output, label, pipelines: [B, 8] arrays. Returns scalar float32 loss.

    Matches nn.BCEWithLogitsLoss()(output * mask, label) with
    mask[idx, :IsSpam] = 0 for samples whose pipeline is exactly one-hot 'Empty'.
    """
    B, C = output.shape
    assert C == NUM_CLASSES

    # per-sample Empty-only flag -> per-element int8 keep-mask (1 byte/elem streamed)
    p = pipelines.astype(jnp.float32)
    is_empty_only = (jnp.sum(p, axis=1) == 1.0) & (p[:, EMPTY_IDX] == 1.0)      # [B]
    # TODO(synk): the PyTorch forward also asserts label[idx, IsSpam] == 1 for
    # Empty-only samples; that runtime assert has no effect on the loss value.
    col = jnp.arange(C, dtype=jnp.int32)[None, :]
    keep = jnp.logical_not(is_empty_only[:, None] & (col < IS_SPAM_IDX)).astype(jnp.int8)

    # flat layout: [B, 8] row-major -> [rows, 128]; class index = lane % 8 (implicit)
    n = B * C
    rows = pl.cdiv(n, LANE)
    rows_per_slice = pl.cdiv(rows, NUM_SLICES)
    tr = max(ROW_ALIGN,
             min(_round_up(tile_rows, ROW_ALIGN), _round_up(rows_per_slice, ROW_ALIGN)))
    grid_r = pl.cdiv(rows_per_slice, tr)
    rows_pad = NUM_SLICES * grid_r * tr
    pad = rows_pad * LANE - n

    x = output.reshape(-1)
    y = label.reshape(-1)
    m = keep.reshape(-1)
    if pad:
        x = jnp.pad(x, (0, pad), constant_values=PAD_LOGIT)
        y = jnp.pad(y, (0, pad), constant_values=0)
        m = jnp.pad(m, (0, pad), constant_values=1)
    x2 = x.reshape(rows_pad, LANE)
    y2 = y.reshape(rows_pad, LANE)
    m2 = m.reshape(rows_pad, LANE)

    kernel = partial(_masked_bce_loss_kernel, inv_bc=1.0 / float(n))

    bytes_accessed = (x2.size * x2.dtype.itemsize + y2.size * y2.dtype.itemsize
                      + m2.size * m2.dtype.itemsize + NUM_SLICES * 8 * LANE * 4)
    cost = pl.CostEstimate(flops=10 * n, transcendentals=2 * n,
                           bytes_accessed=int(bytes_accessed))

    partials = pl.pallas_call(
        kernel,
        out_shape=jax.ShapeDtypeStruct((NUM_SLICES, 8, LANE), jnp.float32),
        grid=(NUM_SLICES, grid_r),
        in_specs=[
            pl.BlockSpec((tr, LANE), lambda i, r: (i * grid_r + r, 0)),
            pl.BlockSpec((tr, LANE), lambda i, r: (i * grid_r + r, 0)),
            pl.BlockSpec((tr, LANE), lambda i, r: (i * grid_r + r, 0)),
        ],
        out_specs=pl.BlockSpec((1, 8, LANE), lambda i, r: (i, 0, 0)),
        scratch_shapes=[pltpu.VMEM((tr, LANE), jnp.float32)],
        compiler_params=pltpu.CompilerParams(
            dimension_semantics=("parallel", "arbitrary"),   # slice axis || , batch reduction
            vmem_limit_bytes=32 * 1024 * 1024,               # safe on v5e..v7x for tr<=8192
        ),
        cost_estimate=cost,
    )(x2, y2, m2)

    # each slice broadcast-wrote its (already 1/(B*C)-scaled) partial into its block
    return jnp.sum(partials[:, 0, 0])


def _reference_loss(output, label, pipelines):
    """Pure-JAX reference mirroring the PyTorch module (computed in f32)."""
    out = output.astype(jnp.float32)
    lab = label.astype(jnp.float32)
    p = pipelines.astype(jnp.float32)
    cond = (jnp.sum(p, axis=1, keepdims=True) == 1.0) & \
           (p[:, EMPTY_IDX:EMPTY_IDX + 1] == 1.0)
    col = jnp.arange(out.shape[1])[None, :]
    mask = jnp.where(cond & (col < IS_SPAM_IDX), 0.0, 1.0)
    z = out * mask
    return jnp.mean(jnp.maximum(z, 0.0) - z * lab + jnp.log1p(jnp.exp(-jnp.abs(z))))


def _make_inputs(key, B, C):
    k_out, k_lab, k_pipe = jax.random.split(key, 3)
    output = jax.random.normal(k_out, (B, C), dtype=jnp.float32)
    # labels are 0/1 -> bf16 is lossless and halves streamed label bytes
    label = (jax.random.uniform(k_lab, (B, C)) > 0.5).astype(jnp.bfloat16)
    pipe_idx = jax.random.randint(k_pipe, (B,), 0, C)
    pipelines = jax.nn.one_hot(pipe_idx, C, dtype=jnp.float32)
    # force a couple of samples to be Empty-only pipelines
    empty_row = jax.nn.one_hot(EMPTY_IDX, C, dtype=jnp.float32)
    pipelines = pipelines.at[0].set(empty_row)
    pipelines = pipelines.at[min(3, B - 1)].set(empty_row)
    # PyTorch code asserts label[idx, IsSpam] == 1 for those samples; honor it
    label = label.at[0, IS_SPAM_IDX].set(1.0)
    label = label.at[min(3, B - 1), IS_SPAM_IDX].set(1.0)
    return output, label, pipelines


if __name__ == "__main__":
    key = jax.random.PRNGKey(0)
    k1, k2 = jax.random.split(key)

    # small shape consistent with the module: batch=8, 8 spam-subtype classes
    B, C = 8, NUM_CLASSES
    output, label, pipelines = _make_inputs(k1, B, C)
    loss = custom_masked_loss(output, label, pipelines)
    jax.block_until_ready(loss)
    ref = _reference_loss(output, label, pipelines)
    assert jnp.allclose(loss, ref, atol=1e-5, rtol=1e-5), (loss, ref)

    # exercise multi-step accumulation + element padding (B*8 not a multiple of 128*32*2)
    B2 = 3000
    output2, label2, pipelines2 = _make_inputs(k2, B2, C)
    loss2 = custom_masked_loss(output2, label2, pipelines2, tile_rows=32)
    jax.block_until_ready(loss2)
    ref2 = _reference_loss(output2, label2, pipelines2)
    assert jnp.allclose(loss2, ref2, atol=1e-5, rtol=1e-5), (loss2, ref2)

    print("KERNEL_OK")
</pallas_src>

<mosaic_0001>
module attributes {stable_mosaic.version = 11 : i64} {
  func.func @_masked_bce_loss_kernel(%arg0: i32, %arg1: i32, %arg2: memref<32x128xf32, #tpu.memory_space<vmem>>, %arg3: memref<32x128xbf16, #tpu.memory_space<vmem>>, %arg4: memref<32x128xi8, #tpu.memory_space<vmem>>, %arg5: memref<1x8x128xf32, #tpu.memory_space<vmem>>, %arg6: memref<32x128xf32, #tpu.memory_space<vmem>>) attributes {dimension_semantics = [#tpu.dimension_semantics<parallel>, #tpu.dimension_semantics<arbitrary>], iteration_bounds = array<i64: 2, 1>, scalar_prefetch = 0 : i64, scratch_operands = 1 : i64, tpu.core_type = #tpu.core_type<tc>, window_params = [{transform_indices = @transform_0, window_bounds = array<i64: 32, 128>}, {transform_indices = @transform_1, window_bounds = array<i64: 32, 128>}, {transform_indices = @transform_2, window_bounds = array<i64: 32, 128>}, {transform_indices = @transform_3, window_bounds = array<i64: 1, 8, 128>}]} {
    %c0_i32 = arith.constant 0 : i32
    %0 = arith.cmpi eq, %arg1, %c0_i32 : i32
    %1 = arith.extui %0 : i1 to i32
    %c0_i32_0 = arith.constant 0 : i32
    %2 = arith.cmpi ne, %1, %c0_i32_0 : i32
    scf.if %2 {
      %cst_13 = arith.constant 0.000000e+00 : f32
      %25 = vector.broadcast %cst_13 : f32 to vector<32x128xf32>
      %c0_14 = arith.constant 0 : index
      %c0_15 = arith.constant 0 : index
      %26 = vector.load %arg6[%c0_14, %c0_15] : memref<32x128xf32, #tpu.memory_space<vmem>>, vector<32x128xf32>
      tpu.vector_store %arg6[%c0_14, %c0_15], %25 {strides = array<i32>} : memref<32x128xf32, #tpu.memory_space<vmem>>, vector<32x128xf32>,
    } else {
    }
    %c0 = arith.constant 0 : index
    %c0_1 = arith.constant 0 : index
    %3 = vector.load %arg2[%c0, %c0_1] : memref<32x128xf32, #tpu.memory_space<vmem>>, vector<32x128xf32>
    %c0_2 = arith.constant 0 : index
    %c0_3 = arith.constant 0 : index
    %4 = vector.load %arg3[%c0_2, %c0_3] : memref<32x128xbf16, #tpu.memory_space<vmem>>, vector<32x128xbf16>
    %5 = arith.extf %4 : vector<32x128xbf16> to vector<32x128xf32>
    %c0_4 = arith.constant 0 : index
    %c0_5 = arith.constant 0 : index
    %6 = vector.load %arg4[%c0_4, %c0_5] : memref<32x128xi8, #tpu.memory_space<vmem>>, vector<32x128xi8>
    %7 = arith.sitofp %6 : vector<32x128xi8> to vector<32x128xf32>
    %8 = arith.mulf %3, %7 : vector<32x128xf32>
    %cst = arith.constant 0.000000e+00 : f32
    %9 = vector.broadcast %cst : f32 to vector<32x128xf32>
    %10 = arith.maximumf %8, %9 : vector<32x128xf32>
    %11 = arith.mulf %8, %5 : vector<32x128xf32>
    %12 = arith.subf %10, %11 : vector<32x128xf32>
    %13 = math.absf %8 : vector<32x128xf32>
    %cst_6 = arith.constant 0.000000e+00 : f32
    %14 = vector.broadcast %cst_6 : f32 to vector<32x128xf32>
    %15 = arith.subf %14, %13 : vector<32x128xf32>
    %16 = math.exp %15 : vector<32x128xf32>
    %17 = math.log1p %16 : vector<32x128xf32>
    %18 = arith.addf %12, %17 : vector<32x128xf32>
    %c0_7 = arith.constant 0 : index
    %c0_8 = arith.constant 0 : index
    %19 = vector.load %arg6[%c0_7, %c0_8] : memref<32x128xf32, #tpu.memory_space<vmem>>, vector<32x128xf32>
    %20 = arith.addf %19, %18 : vector<32x128xf32>
    %c0_9 = arith.constant 0 : index
    %c0_10 = arith.constant 0 : index
    %21 = vector.load %arg6[%c0_9, %c0_10] : memref<32x128xf32, #tpu.memory_space<vmem>>, vector<32x128xf32>
    tpu.vector_store %arg6[%c0_9, %c0_10], %20 {strides = array<i32>} : memref<32x128xf32, #tpu.memory_space<vmem>>, vector<32x128xf32>,
    %c0_i32_11 = arith.constant 0 : i32
    %22 = arith.cmpi eq, %arg1, %c0_i32_11 : i32
    %23 = arith.extui %22 : i1 to i32
    %c0_i32_12 = arith.constant 0 : i32
    %24 = arith.cmpi ne, %23, %c0_i32_12 : i32
    scf.if %24 {
      %c0_13 = arith.constant 0 : index
      %c0_14 = arith.constant 0 : index
      %25 = vector.load %arg6[%c0_13, %c0_14] : memref<32x128xf32, #tpu.memory_space<vmem>>, vector<32x128xf32>
      %26 = vector.shape_cast %25 : vector<32x128xf32> to vector<1x32x128xf32>
      %cst_15 = arith.constant dense<0.000000e+00> : vector<1xf32>
      %27 = vector.multi_reduction <add>, %26, %cst_15 [1, 2] : vector<1x32x128xf32> to vector<1xf32>
      %28 = vector.shape_cast %27 : vector<1xf32> to vector<1x1x1xf32>
      %29 = vector.extract %28[0, 0, 0] : f32 from vector<1x1x1xf32>
      %cst_16 = arith.constant 1.562500e-02 : f32
      %30 = arith.mulf %29, %cst_16 : f32
      %cst_17 = arith.constant 0.000000e+00 : f32
      %31 = vector.broadcast %cst_17 : f32 to vector<1x8x128xf32>
      %32 = vector.broadcast %30 : f32 to vector<1x8x128xf32>
      %33 = arith.addf %31, %32 : vector<1x8x128xf32>
      %c0_18 = arith.constant 0 : index
      %c0_19 = arith.constant 0 : index
      %c0_20 = arith.constant 0 : index
      %34 = vector.load %arg5[%c0_18, %c0_19, %c0_20] : memref<1x8x128xf32, #tpu.memory_space<vmem>>, vector<1x8x128xf32>
      tpu.vector_store %arg5[%c0_18, %c0_19, %c0_20], %33 {strides = array<i32>} : memref<1x8x128xf32, #tpu.memory_space<vmem>>, vector<1x8x128xf32>,
    } else {
    }
    return
  }
  func.func @transform_0(%arg0: i32, %arg1: i32) -> (i32, i32) {
    %c1_i32 = arith.constant 1 : i32
    %0 = arith.muli %arg0, %c1_i32 : i32
    %1 = arith.addi %0, %arg1 : i32
    %c0_i32 = arith.constant 0 : i32
    %c0_i32_0 = arith.constant 0 : i32
    return %1, %c0_i32 : i32, i32
  }
  func.func @transform_1(%arg0: i32, %arg1: i32) -> (i32, i32) {
    %c1_i32 = arith.constant 1 : i32
    %0 = arith.muli %arg0, %c1_i32 : i32
    %1 = arith.addi %0, %arg1 : i32
    %c0_i32 = arith.constant 0 : i32
    %c0_i32_0 = arith.constant 0 : i32
    return %1, %c0_i32 : i32, i32
  }
  func.func @transform_2(%arg0: i32, %arg1: i32) -> (i32, i32) {
    %c1_i32 = arith.constant 1 : i32
    %0 = arith.muli %arg0, %c1_i32 : i32
    %1 = arith.addi %0, %arg1 : i32
    %c0_i32 = arith.constant 0 : i32
    %c0_i32_0 = arith.constant 0 : i32
    return %1, %c0_i32 : i32, i32
  }
  func.func @transform_3(%arg0: i32, %arg1: i32) -> (i32, i32, i32) {
    %c0_i32 = arith.constant 0 : i32
    %c0_i32_0 = arith.constant 0 : i32
    %c0_i32_1 = arith.constant 0 : i32
    return %arg0, %c0_i32, %c0_i32_0 : i32, i32, i32
  }
}

</mosaic_0001>

<llo_original>
// kernel: tpu_custom_call.1
$region0: #{tpu_custom_call.1}
  #allocation0 [shape = 'u32[]', space=smem, size = 0x4, offset = 0x4, fixed_abs, tag = 'smem constant byte address 0x4 - core index']
  #allocation1 [shape = 'u32[144,128]{1,0:T(1,128)}', space=vmem, size = 0x12000, scoped, tag = 'internal scratch']
  #allocation2 [shape = 'f32[32,128]{1,0:T(8,128)}', space=vmem, size = 0x4000, scoped, tag = 'scratch operand']
  %s0 = inlined_call_operand.hbm [shape: f32[64,128], index: 0, kind: input, shape index: {}]
  %s1 = inlined_call_operand.hbm [shape: bf16[64,128], index: 1, kind: input, shape index: {}]
  %s2 = inlined_call_operand.hbm [shape: s8[64,128], index: 2, kind: input, shape index: {}]
  %s3 = inlined_call_operand.hbm [shape: f32[2,8,128], index: 3, kind: output, shape index: {}]
  %s4 = sld [smem:[#allocation0]]
  $region65: #{tpu_custom_call.1} parent=0
    _
  %s6 = ssub.s32 1, %s4
  %s7 = scalar_select 0, %s6, %s4
  $region1: #{tpu_custom_call.1} parent=0
    #allocation3 [shape = 'u8[32768]{0}', space=vmem, size = 0x8000, scoped, tag = 'input window, operand 0']
    #allocation4 [shape = 's32[2]{0}', space=sflag, size = 0x8, scoped, tag = 'scoped memory for tpu_custom_call.1']
    #allocation5 [shape = 's32[2]{0}', space=sflag, size = 0x8, scoped, tag = 'scoped memory for tpu_custom_call.1']
    #allocation6 [shape = 'u8[16384]{0}', space=vmem, size = 0x4000, scoped, tag = 'input window, operand 1']
    #allocation7 [shape = 's32[2]{0}', space=sflag, size = 0x8, scoped, tag = 'scoped memory for tpu_custom_call.1']
    #allocation8 [shape = 'u8[8192]{0}', space=vmem, size = 0x2000, scoped, tag = 'input window, operand 2']
    #allocation9 [shape = 'u8[8192]{0}', space=vmem, size = 0x2000, scoped, tag = 'output window, operand 0']
    %8 = vsyncpa [#allocation4], 0
    %s9 = scalar_lea.sflag [#allocation4], 1
    %10 = vsyncpa %s9, 0
    %11 = vsyncpa [#allocation7], 0
    %s12 = scalar_lea.sflag [#allocation7], 1
    %13 = vsyncpa %s12, 0
    %14 = vsyncpa [#allocation5], 0
    %s15 = scalar_lea.sflag [#allocation5], 1
    %16 = vsyncpa %s15, 0
    loop: start=0, step=1, limit=4
    $region2: #{tpu_custom_call.1} parent=1 // loop_pre_header
      _
    $region3: #{tpu_custom_call.1} parent=1 // loop_header
      %s18 = sphi 0, %s22
      %p19 = scmp.ge.s32.totalorder %s18, 4
      %s25 = sphi 0, %s37
      %s26 = sphi 0, %s33
      %s27 = sphi 0, %s25
      %s28 = sphi 0, %s26
      %s29 = sphi 0, %s27
      %s30 = sphi 0, %s28
      %s42 = sphi 0, %s44
      %s45 = sphi 0, %s42
      %s46 = sphi 0, %s45
      %s62 = sphi 0, %s46
      %s70 = sphi 0, %s72
      %s73 = sphi 0, %s70
      %s74 = sphi 0, %s73
      %s90 = sphi 0, %s74
      %s98 = sphi 0, %s100
      %s101 = sphi 0, %s98
      %s102 = sphi 0, %s101
      %s118 = sphi 0, %s102
      %s124 = sphi 0, %s126
      %s127 = sphi 0, %s124
      %s128 = sphi 0, %s127
      %s144 = sphi 0, %s128
    $region4: #{tpu_custom_call.1} parent=1 // loop_header_branch
      %21 = sbr.rel (%p19) target = $region8
    $region5: #{tpu_custom_call.1} parent=1 // loop_body
      %s23 = ssub.s32 %s18, 1
      %s24 = ssub.s32 %s18, 2
      %s31 = sadd.s32 1, %s26
      %p32 = scmp.ge.s32.totalorder %s31, 1
      %s33 = scalar_select %p32, 0, %s31
      %s34 = sadd.s32 1, %s25
      %s35 = scalar_select %p32, %s34, %s25
      %p36 = scmp.ge.s32.totalorder %s35, 2
      %s37 = scalar_select %p36, 0, %s35
      %s38 = sadd.s32 %s25, %s26
      %s39 = sadd.s32 %s37, %s33
      %s40 = ssub.s32 %s38, %s39
      %p41 = scmp.eq.s32.totalorder %s40, 0
      %s43 = sadd.s32 %s42, 1
      %s44 = scalar_select %p41, %s42, %s43
      %p47 = pneg %p41
      %p48 = scmp.eq.s32.totalorder %s18, 1
      %p49 = por %p47, %p48
      %p50 = scmp.ne.s32.totalorder %s42, %s45
      %p51 = scmp.eq.s32.totalorder %s18, 0
      %p52 = por %p50, %p51
      %p53 = scmp.ne.s32.totalorder %s42, %s45
      %p54 = scmp.eq.s32.totalorder %s23, 1
      %p55 = por %p53, %p54
      %p56 = scmp.ne.s32.totalorder %s45, %s46
      %p57 = scmp.eq.s32.totalorder %s23, 0
      %p58 = por %p56, %p57
      %p59 = scmp.ne.s32.totalorder %s45, %s46
      %p60 = scmp.eq.s32.totalorder %s24, 1
      %p61 = por %p59, %p60
      %p63 = scmp.ne.s32.totalorder %s46, %s62
      %p64 = scmp.eq.s32.totalorder %s24, 0
      %p65 = por %p63, %p64
      %s66 = sadd.s32 %s25, %s26
      %s67 = sadd.s32 %s37, %s33
      %s68 = ssub.s32 %s66, %s67
      %p69 = scmp.eq.s32.totalorder %s68, 0
      %s71 = sadd.s32 %s70, 1
      %s72 = scalar_select %p69, %s70, %s71
      %p75 = pneg %p69
      %p76 = scmp.eq.s32.totalorder %s18, 1
      %p77 = por %p75, %p76
      %p78 = scmp.ne.s32.totalorder %s70, %s73
      %p79 = scmp.eq.s32.totalorder %s18, 0
      %p80 = por %p78, %p79
      %p81 = scmp.ne.s32.totalorder %s70, %s73
      %p82 = scmp.eq.s32.totalorder %s23, 1
      %p83 = por %p81, %p82
      %p84 = scmp.ne.s32.totalorder %s73, %s74
      %p85 = scmp.eq.s32.totalorder %s23, 0
      %p86 = por %p84, %p85
      %p87 = scmp.ne.s32.totalorder %s73, %s74
      %p88 = scmp.eq.s32.totalorder %s24, 1
      %p89 = por %p87, %p88
      %p91 = scmp.ne.s32.totalorder %s74, %s90
      %p92 = scmp.eq.s32.totalorder %s24, 0
      %p93 = por %p91, %p92
      %s94 = sadd.s32 %s25, %s26
      %s95 = sadd.s32 %s37, %s33
      %s96 = ssub.s32 %s94, %s95
      %p97 = scmp.eq.s32.totalorder %s96, 0
      %s99 = sadd.s32 %s98, 1
      %s100 = scalar_select %p97, %s98, %s99
      %p103 = pneg %p97
      %p104 = scmp.eq.s32.totalorder %s18, 1
      %p105 = por %p103, %p104
      %p106 = scmp.ne.s32.totalorder %s98, %s101
      %p107 = scmp.eq.s32.totalorder %s18, 0
      %p108 = por %p106, %p107
      %p109 = scmp.ne.s32.totalorder %s98, %s101
      %p110 = scmp.eq.s32.totalorder %s23, 1
      %p111 = por %p109, %p110
      %p112 = scmp.ne.s32.totalorder %s101, %s102
      %p113 = scmp.eq.s32.totalorder %s23, 0
      %p114 = por %p112, %p113
      %p115 = scmp.ne.s32.totalorder %s101, %s102
      %p116 = scmp.eq.s32.totalorder %s24, 1
      %p117 = por %p115, %p116
      %p119 = scmp.ne.s32.totalorder %s102, %s118
      %p120 = scmp.eq.s32.totalorder %s24, 0
      %p121 = por %p119, %p120
      %s122 = ssub.s32 %s25, %s37
      %p123 = scmp.eq.s32.totalorder %s122, 0
      %s125 = sadd.s32 %s124, 1
      %s126 = scalar_select %p123, %s124, %s125
      %p129 = pneg %p123
      %p130 = scmp.eq.s32.totalorder %s18, 1
      %p131 = por %p129, %p130
      %p132 = scmp.ne.s32.totalorder %s124, %s127
      %p133 = scmp.eq.s32.totalorder %s18, 0
      %p134 = por %p132, %p133
      %p135 = scmp.ne.s32.totalorder %s124, %s127
      %p136 = scmp.eq.s32.totalorder %s23, 1
      %p137 = por %p135, %p136
      %p138 = scmp.ne.s32.totalorder %s127, %s128
      %p139 = scmp.eq.s32.totalorder %s23, 0
      %p140 = por %p138, %p139
      %p141 = scmp.ne.s32.totalorder %s127, %s128
      %p142 = scmp.eq.s32.totalorder %s24, 1
      %p143 = por %p141, %p142
      %p145 = scmp.ne.s32.totalorder %s128, %s144
      %p146 = scmp.eq.s32.totalorder %s24, 0
      %p147 = por %p145, %p146
      %p148 = scmp.le.s32.totalorder 1, %s18
      %p149 = scmp.lt.s32.totalorder %s18, 3
      %p150 = pnand %p148, %p149
      %p151 = pneg %p150
      // Predicated region
      $region9: #{tpu_custom_call.1} parent=5 // pred_check
        _
      $region10: #{tpu_custom_call.1} parent=5 // pred_check_branch
        %153 = sbr.rel (%p150) target = $region12
      $region11: #{tpu_custom_call.1} parent=5 // pred_region
        %s154 = ssub.s32 %s18, 1
      $region12: #{tpu_custom_call.1} parent=5 // pred_fallthru
        _
      %p155 = scmp.lt.s32.totalorder %s18, 2
      // Predicated region
      $region13: #{tpu_custom_call.1} parent=5 // pred_check
        %p156 = pneg %p155
      $region14: #{tpu_custom_call.1} parent=5 // pred_check_branch
        %158 = sbr.rel (%p156) target = $region16
      $region15: #{tpu_custom_call.1} parent=5 // pred_region
        // Predicated region
        $region17: #{tpu_custom_call.1} parent=15 // pred_check
          %p159 = pneg %p52
        $region18: #{tpu_custom_call.1} parent=15 // pred_check_branch
          %161 = sbr.rel (%p159) target = $region20
        $region19: #{tpu_custom_call.1} parent=15 // pred_region
          %s162 = sand.u32 %s42, 1
          %s163 = scalar_lea.sflag [#allocation4], %s162
          %s164 = sand.u32 %s42, 1
          %s165 = smul.addr %s164, 32
          %s166 = scalar_lea.vmem [#allocation3], %s165
          %s167 = sadd.s32 %s25, %s26
          %s168 = smul.u32 4, %s167
          %s170 = ssub.s32 512, 512
          %171 = vsyncadd %s163, %s170
          %s172 = smul.addr %s168, 128
          %s173 = scalar_lea.hbm %s0, %s172
          %s174 = sshll.u32 %s166, 4
          %s175 = int_to_ptr.vmem [resolvable:$true] %s174
          %180 = dma.hbm_to_vmem [thread:$0]  %s173, 512, %s175, %s163, 128, 128, 8
        $region20: #{tpu_custom_call.1} parent=15 // pred_fallthru
          _
        // Predicated region
        $region21: #{tpu_custom_call.1} parent=15 // pred_check
          %p181 = pneg %p80
        $region22: #{tpu_custom_call.1} parent=15 // pred_check_branch
          %183 = sbr.rel (%p181) target = $region24
        $region23: #{tpu_custom_call.1} parent=15 // pred_region
          %s184 = sand.u32 %s18, 1
          %s185 = scalar_lea.sflag [#allocation7], %s184
          %s186 = sand.u32 %s70, 1
          %s187 = smul.addr %s186, 16
          %s188 = scalar_lea.vmem [#allocation6], %s187
          %s189 = sadd.s32 %s25, %s26
          %s190 = smul.u32 4, %s189
          %s192 = ssub.s32 256, 256
          %193 = vsyncadd %s185, %s192
          %s194 = smul.addr %s190, 64
          %s195 = scalar_lea.hbm %s1, %s194
          %s196 = sshll.u32 %s188, 4
          %s197 = int_to_ptr.vmem [resolvable:$true] %s196
          %202 = dma.hbm_to_vmem [thread:$0]  %s195, 256, %s197, %s185, 64, 64, 4
        $region24: #{tpu_custom_call.1} parent=15 // pred_fallthru
          _
        // Predicated region
        $region25: #{tpu_custom_call.1} parent=15 // pred_check
          %p203 = pneg %p108
        $region26: #{tpu_custom_call.1} parent=15 // pred_check_branch
          %205 = sbr.rel (%p203) target = $region28
        $region27: #{tpu_custom_call.1} parent=15 // pred_region
          %s206 = sand.u32 %s18, 1
          %s207 = scalar_lea.sflag [#allocation7], %s206
          %s208 = sand.u32 %s98, 1
          %s209 = smul.addr %s208, 8
          %s210 = scalar_lea.vmem [#allocation8], %s209
          %s211 = sadd.s32 %s25, %s26
          %s213 = ssub.s32 128, 128
          %214 = vsyncadd %s207, %s213
          %s215 = smul.addr %s211, 128
          %s216 = scalar_lea.hbm %s2, %s215
          %s218 = sshll.u32 %s210, 4
          %s219 = int_to_ptr.vmem [resolvable:$true] %s218
          %221 = dma.hbm_to_vmem [thread:$0]  %s216, 128, %s219, %s207
        $region28: #{tpu_custom_call.1} parent=15 // pred_fallthru
          _
      $region16: #{tpu_custom_call.1} parent=5 // pred_fallthru
        _
      %p222 = scmp.le.s32.totalorder 1, %s18
      %p223 = scmp.lt.s32.totalorder %s18, 3
      %p224 = pnand %p222, %p223
      %p225 = pneg %p224
      // Predicated region
      $region29: #{tpu_custom_call.1} parent=5 // pred_check
        _
      $region30: #{tpu_custom_call.1} parent=5 // pred_check_branch
        %227 = sbr.rel (%p224) target = $region32
      $region31: #{tpu_custom_call.1} parent=5 // pred_region
        %s228 = ssub.s32 %s18, 1
        %s229 = sand.u32 %s45, 1
        %s230 = scalar_lea.sflag [#allocation4], %s229
        %s231 = sand.u32 %s45, 1
        %s232 = smul.addr %s231, 32
        %s233 = scalar_lea.vmem [#allocation3], %s232
        // Predicated region
        $region33: #{tpu_custom_call.1} parent=31 // pred_check
          %p234 = pneg %p58
        $region34: #{tpu_custom_call.1} parent=31 // pred_check_branch
          %236 = sbr.rel (%p234) target = $region36
        $region35: #{tpu_custom_call.1} parent=31 // pred_region
          %237 = dma.done %s230, 512
        $region36: #{tpu_custom_call.1} parent=31 // pred_fallthru
          _
        %s238 = sand.u32 %s23, 1
        %s239 = scalar_lea.sflag [#allocation7], %s238
        %s240 = sand.u32 %s73, 1
        %s241 = smul.addr %s240, 16
        %s242 = scalar_lea.vmem [#allocation6], %s241
        // Predicated region
        $region37: #{tpu_custom_call.1} parent=31 // pred_check
          %p243 = pneg %p86
        $region38: #{tpu_custom_call.1} parent=31 // pred_check_branch
          %245 = sbr.rel (%p243) target = $region40
        $region39: #{tpu_custom_call.1} parent=31 // pred_region
          %246 = dma.done %s239, 256
        $region40: #{tpu_custom_call.1} parent=31 // pred_fallthru
          _
        %s247 = sand.u32 %s23, 1
        %s248 = scalar_lea.sflag [#allocation7], %s247
        %s249 = sand.u32 %s101, 1
        %s250 = smul.addr %s249, 8
        %s251 = scalar_lea.vmem [#allocation8], %s250
        // Predicated region
        $region41: #{tpu_custom_call.1} parent=31 // pred_check
          %p252 = pneg %p114
        $region42: #{tpu_custom_call.1} parent=31 // pred_check_branch
          %254 = sbr.rel (%p252) target = $region44
        $region43: #{tpu_custom_call.1} parent=31 // pred_region
          %255 = dma.done %s248, 128
        $region44: #{tpu_custom_call.1} parent=31 // pred_fallthru
          _
        %s256 = sand.u32 %s45, 1
        %s257 = scalar_lea.sflag [#allocation4], %s256
        %s258 = sand.u32 %s45, 1
        %s259 = smul.addr %s258, 32
        %s260 = scalar_lea.vmem [#allocation3], %s259
        %p261 = pneg %p58
        %p262 = pneg %p55
        %s263 = sand.u32 %s23, 1
        %s264 = scalar_lea.sflag [#allocation7], %s263
        %s265 = sand.u32 %s73, 1
        %s266 = smul.addr %s265, 16
        %s267 = scalar_lea.vmem [#allocation6], %s266
        %p268 = pneg %p86
        %p269 = pneg %p83
        %s270 = sand.u32 %s23, 1
        %s271 = scalar_lea.sflag [#allocation7], %s270
        %s272 = sand.u32 %s101, 1
        %s273 = smul.addr %s272, 8
        %s274 = scalar_lea.vmem [#allocation8], %s273
        %p275 = pneg %p114
        %p276 = pneg %p111
        %p277 = pneg %p140
        %p278 = pneg %p137
        %s279 = sand.u32 %s127, 1
        %s280 = scalar_lea.sflag [#allocation5], %s279
        %s281 = sand.u32 %s127, 1
        %s282 = smul.addr %s281, 8
        %s283 = scalar_lea.vmem [#allocation9], %s282
        %s284 = sadd.s32 %s27, %s28
        %s285 = smul.u32 4, %s284
        %s286 = sadd.s32 %s27, %s28
        %s287 = smul.u32 4, %s286
        %s288 = sadd.s32 %s27, %s28
        %p289 = scmp.eq.s32.totalorder %s28, 0
        // Predicated region
        $region45: #{tpu_custom_call.1} parent=31 // pred_check
          %p290 = pneg %p289
        $region46: #{tpu_custom_call.1} parent=31 // pred_check_branch
          %292 = sbr.rel (%p290) target = $region48
        $region47: #{tpu_custom_call.1} parent=31 // pred_region
          %293 = vst [vmem:[#allocation2] sm:$0xff] 0.0
          %294 = vst [vmem:[#allocation2 + $0x8] sm:$0xff] 0.0
          %295 = vst [vmem:[#allocation2 + $0x10] sm:$0xff] 0.0
          %296 = vst [vmem:[#allocation2 + $0x18] sm:$0xff] 0.0
        $region48: #{tpu_custom_call.1} parent=31 // pred_fallthru
          _
        %v297 = vld [vmem:[%s233] sm:$0xff]
        %v298 = vld [vmem:[%s233 + $0x8] sm:$0xff]
        %v299 = vld [vmem:[%s233 + $0x10] sm:$0xff]
        %v300 = vld [vmem:[%s233 + $0x18] sm:$0xff]
        %v301 = vld [vmem:[%s242] sm:$0xf]
        %v302 = vld [vmem:[%s242 + $0x4] sm:$0xf]
        %v303 = vld [vmem:[%s242 + $0x8] sm:$0xf]
        %v304 = vld [vmem:[%s242 + $0xc] sm:$0xf]
        %v305 = vunpack.c.l.bf16 %v301
        %v306 = vunpack.c.l.bf16 %v302
        %v307 = vunpack.c.l.bf16 %v303
        %v308 = vunpack.c.l.bf16 %v304
        %v309 = vld [vmem:[%s251] sm:$0xff]
        %v310 = vunpack.c.0.s8 %v309
        %v311 = vunpack.c.1.s8 %v309
        %v312 = vunpack.c.2.s8 %v309
        %v313 = vunpack.c.3.s8 %v309
        %v314 = vcvt.s32.f32 %v310
        %v315 = vcvt.s32.f32 %v311
        %v316 = vcvt.s32.f32 %v312
        %v317 = vcvt.s32.f32 %v313
        %v318 = vmul.f32 %v297, %v314
        %v319 = vmul.f32 %v298, %v315
        %v320 = vmul.f32 %v299, %v316
        %v321 = vmul.f32 %v300, %v317
        %v322 = vmax.f32 %v318, 0.0
        %v323 = vmax.f32 %v319, 0.0
        %v324 = vmax.f32 %v320, 0.0
        %v325 = vmax.f32 %v321, 0.0
        %v326 = vmul.f32 %v318, %v305
        %v327 = vmul.f32 %v319, %v306
        %v328 = vmul.f32 %v320, %v307
        %v329 = vmul.f32 %v321, %v308
        %v330 = vsub.f32 %v322, %v326
        %v331 = vsub.f32 %v323, %v327
        %v332 = vsub.f32 %v324, %v328
        %v333 = vsub.f32 %v325, %v329
        %v334 = vand.u32 2147483647, %v318
        %v335 = vand.u32 2147483647, %v319
        %v336 = vand.u32 2147483647, %v320
        %v337 = vand.u32 2147483647, %v321
        %v338 = vsub.f32 0.0, %v334
        %v339 = vsub.f32 0.0, %v335
        %v340 = vsub.f32 0.0, %v336
        %v341 = vsub.f32 0.0, %v337
        %v342 = vmul.f32 %v338, 1.442695
        %v343 = vpow.pop %v342
        %v344 = vmul.f32 %v339, 1.442695
        %v345 = vpow.pop %v344
        %v346 = vmul.f32 %v340, 1.442695
        %v347 = vpow.pop %v346
        %v348 = vmul.f32 %v341, 1.442695
        %v349 = vpow.pop %v348
        %v350 = vadd.f32 %v343, 1.0
        %v351 = vlog2.pop %v350
        %v352 = vmul.f32 %v351, 0.6931472
        %v353 = vmul.f32 -0.5, %v343
        %v354 = vadd.f32 %v353, 1.0
        %v355 = vmul.f32 %v354, %v343
        %v356 = vand.u32 2147483647, %v343
        %vm357 = vcmp.lt.f32.partialorder %v356, 0.0004427343
        %v358 = vsel %vm357, %v355, %v352
        %v359 = vadd.f32 %v345, 1.0
        %v360 = vlog2.pop %v359
        %v361 = vmul.f32 %v360, 0.6931472
        %v362 = vmul.f32 -0.5, %v345
        %v363 = vadd.f32 %v362, 1.0
        %v364 = vmul.f32 %v363, %v345
        %v365 = vand.u32 2147483647, %v345
        %vm366 = vcmp.lt.f32.partialorder %v365, 0.0004427343
        %v367 = vsel %vm366, %v364, %v361
        %v368 = vadd.f32 %v347, 1.0
        %v369 = vlog2.pop %v368
        %v370 = vmul.f32 %v369, 0.6931472
        %v371 = vmul.f32 -0.5, %v347
        %v372 = vadd.f32 %v371, 1.0
        %v373 = vmul.f32 %v372, %v347
        %v374 = vand.u32 2147483647, %v347
        %vm375 = vcmp.lt.f32.partialorder %v374, 0.0004427343
        %v376 = vsel %vm375, %v373, %v370
        %v377 = vadd.f32 %v349, 1.0
        %v378 = vlog2.pop %v377
        %v379 = vmul.f32 %v378, 0.6931472
        %v380 = vmul.f32 -0.5, %v349
        %v381 = vadd.f32 %v380, 1.0
        %v382 = vmul.f32 %v381, %v349
        %v383 = vand.u32 2147483647, %v349
        %vm384 = vcmp.lt.f32.partialorder %v383, 0.0004427343
        %v385 = vsel %vm384, %v382, %v379
        %v386 = vadd.f32 %v330, %v358
        %v387 = vadd.f32 %v331, %v367
        %v388 = vadd.f32 %v332, %v376
        %v389 = vadd.f32 %v333, %v385
        %v390 = vld [vmem:[#allocation2] sm:$0xff]
        %v391 = vld [vmem:[#allocation2 + $0x8] sm:$0xff]
        %v392 = vld [vmem:[#allocation2 + $0x10] sm:$0xff]
        %v393 = vld [vmem:[#allocation2 + $0x18] sm:$0xff]
        %v394 = vadd.f32 %v390, %v386
        %v395 = vadd.f32 %v391, %v387
        %v396 = vadd.f32 %v392, %v388
        %v397 = vadd.f32 %v393, %v389
        %398 = vst [vmem:[#allocation2] sm:$0xff] %v394
        %399 = vst [vmem:[#allocation2 + $0x8] sm:$0xff] %v395
        %400 = vst [vmem:[#allocation2 + $0x10] sm:$0xff] %v396
        %401 = vst [vmem:[#allocation2 + $0x18] sm:$0xff] %v397
        // Predicated region
        $region49: #{tpu_custom_call.1} parent=31 // pred_check
          %p402 = pneg %p289
        $region50: #{tpu_custom_call.1} parent=31 // pred_check_branch
          %404 = sbr.rel (%p402) target = $region52
        $region51: #{tpu_custom_call.1} parent=31 // pred_region
          %v405 = vld [vmem:[#allocation2] sm:$0xff]
          %v406 = vld [vmem:[#allocation2 + $0x8] sm:$0xff]
          %v407 = vld [vmem:[#allocation2 + $0x10] sm:$0xff]
          %v408 = vld [vmem:[#allocation2 + $0x18] sm:$0xff]
          %v409 = vadd.f32 %v405, %v406
          %v410 = vadd.f32 %v409, %v407
          %v411 = vadd.f32 %v410, %v408
          %412 = vadd.xlane.f32.xlu0 %v411
          %v413 = vpop.xlane.xlu0 %412
          %v414 = vrot.slane %v413, 4
          %v415 = vadd.f32 %v413, %v414
          %v416 = vrot.slane %v415, 2
          %v417 = vadd.f32 %v415, %v416
          %v418 = vrot.slane %v417, 1
          %v419 = vadd.f32 %v417, %v418
          %s420 = vtos %v419
          %s421 = smul.f32 %s420, 0.015625
          %v422 = vstv %s421
          %v423 = vadd.f32 %v422, 0.0
          %424 = vst [vmem:[%s283] sm:$0xff] %v423
        $region52: #{tpu_custom_call.1} parent=31 // pred_fallthru
          _
        %s425 = sand.u32 %s127, 1
        %s426 = scalar_lea.sflag [#allocation5], %s425
        %s427 = sand.u32 %s127, 1
        %s428 = smul.addr %s427, 8
        %s429 = scalar_lea.vmem [#allocation9], %s428
        // Predicated region
        $region53: #{tpu_custom_call.1} parent=31 // pred_check
          %p430 = pneg %p137
        $region54: #{tpu_custom_call.1} parent=31 // pred_check_branch
          %432 = sbr.rel (%p430) target = $region56
        $region55: #{tpu_custom_call.1} parent=31 // pred_region
          %s434 = ssub.s32 128, 128
          %435 = vsyncadd %s426, %s434
          %s436 = smul.addr %s27, 128
          %s437 = scalar_lea.hbm %s3, %s436
          %s439 = sshll.u32 %s429, 4
          %s440 = int_to_ptr.vmem [resolvable:$true] %s439
          %442 = dma.vmem_to_hbm [thread:$0]  %s440, 128, %s437, %s426
        $region56: #{tpu_custom_call.1} parent=31 // pred_fallthru
          _
      $region32: #{tpu_custom_call.1} parent=5 // pred_fallthru
        _
      %p443 = scmp.le.s32.totalorder 2, %s18
      // Predicated region
      $region57: #{tpu_custom_call.1} parent=5 // pred_check
        %p444 = pneg %p443
      $region58: #{tpu_custom_call.1} parent=5 // pred_check_branch
        %446 = sbr.rel (%p444) target = $region60
      $region59: #{tpu_custom_call.1} parent=5 // pred_region
        %s447 = ssub.s32 %s18, 2
        // Predicated region
        $region61: #{tpu_custom_call.1} parent=59 // pred_check
          %p448 = pneg %p143
        $region62: #{tpu_custom_call.1} parent=59 // pred_check_branch
          %450 = sbr.rel (%p448) target = $region64
        $region63: #{tpu_custom_call.1} parent=59 // pred_region
          %s451 = sand.u32 %s128, 1
          %s452 = scalar_lea.sflag [#allocation5], %s451
          %s453 = sand.u32 %s128, 1
          %s454 = smul.addr %s453, 8
          %s455 = scalar_lea.vmem [#allocation9], %s454
          %456 = dma.done %s452, 128
        $region64: #{tpu_custom_call.1} parent=59 // pred_fallthru
          _
      $region60: #{tpu_custom_call.1} parent=5 // pred_fallthru
        _
    $region6: #{tpu_custom_call.1} parent=1 // loop_footer
      %s22 = sadd.s32 1, %s18
    $region7: #{tpu_custom_call.1} parent=1 // loop_footer_branch
      %17 = sbr.rel target = $region3
    $region8: #{tpu_custom_call.1} parent=1 // loop_exit
      _
    %457 = vsyncpa [#allocation4], 1
    %s458 = scalar_lea.sflag [#allocation4], 1
    %459 = vsyncpa %s458, 1
    %460 = vsyncpa [#allocation7], 1
    %s461 = scalar_lea.sflag [#allocation7], 1
    %462 = vsyncpa %s461, 1
    %463 = vsyncpa [#allocation5], 1
    %s464 = scalar_lea.sflag [#allocation5], 1
    %465 = vsyncpa %s464, 1

</llo_original>
